<compile_context>
chip_gen: v7x
topology: tpu7x:2x2x1
jax: 0.10.0
libtpu: 0.0.40
codegen_flags: <defaults>
</compile_context>

<pallas_src>
import functools

import jax
import jax.numpy as jnp
from jax.experimental import pallas as pl
from jax.experimental.pallas import tpu as pltpu


# ----------------------------------------------------------------------------
# Kernels
# ----------------------------------------------------------------------------
def _smoothmax_lanes_kernel(x_ref, num_ref, den_ref, num_acc, den_acc, *,
                            alpha, tm, hw, n_j_half):
    """Grid = (P, N, n_j_half); x_ref tile is (C, tm)."""
    p = pl.program_id(0)    # parallel split of the lane-tile axis
    ni = pl.program_id(1)   # batch index (reduction)
    j = pl.program_id(2)    # lane-tile index within this p half (reduction)

    @pl.when(jnp.logical_and(ni == 0, j == 0))
    def _init():
        num_acc[...] = jnp.zeros_like(num_acc)
        den_acc[...] = jnp.zeros_like(den_acc)

    x = x_ref[...].astype(jnp.float32)                  # (C, tm)

    # Global lane-tile index (independent of the clamped DMA block index):
    # columns >= hw are masked out, neutralizing the duplicate clamped block
    # on the odd-tile-count half and any tail padding.
    jg = p * n_j_half + j
    col = jg * tm + jax.lax.broadcasted_iota(jnp.int32, x.shape, 1)
    valid = col < hw
    x = jnp.where(valid, x, 0.0)
    w = jnp.where(valid, jnp.exp(alpha * x), 0.0)       # EUP transcendental
    xw = x * w

    # Fold tm lanes down to 128 with pure VPU adds (128-lane aligned slices).
    num_part = xw[:, 0:128]
    den_part = w[:, 0:128]
    for k in range(1, tm // 128):
        lo = k * 128
        num_part = num_part + xw[:, lo:lo + 128]
        den_part = den_part + w[:, lo:lo + 128]
    num_acc[...] += num_part
    den_acc[...] += den_part

    @pl.when(jnp.logical_and(ni == pl.num_programs(1) - 1,
                             j == pl.num_programs(2) - 1))
    def _finalize():
        # Single cross-lane (XLU) reduction per kernel, not per grid step.
        num_ref[...] = jnp.sum(num_acc[...], axis=1, keepdims=True)
        den_ref[...] = jnp.sum(den_acc[...], axis=1, keepdims=True)


def _smoothmax_packed_kernel(x_ref, num_ref, den_ref, num_acc, den_acc, *,
                             alpha, tr, rows, n_j_half):
    """Grid = (P, N, n_j_half); x_ref tile is (C, tr, 128) — sublane-dense."""
    p = pl.program_id(0)
    ni = pl.program_id(1)
    j = pl.program_id(2)

    @pl.when(jnp.logical_and(ni == 0, j == 0))
    def _init():
        num_acc[...] = jnp.zeros_like(num_acc)
        den_acc[...] = jnp.zeros_like(den_acc)

    x = x_ref[...].astype(jnp.float32)                  # (C, tr, 128)

    # Global sublane-row index; rows >= `rows` are tail/clamped duplicates.
    jg = p * n_j_half + j
    row = jg * tr + jax.lax.broadcasted_iota(jnp.int32, x.shape, 1)
    valid = row < rows
    x = jnp.where(valid, x, 0.0)
    w = jnp.where(valid, jnp.exp(alpha * x), 0.0)       # EUP transcendental
    xw = x * w

    # Fold tr sublane-rows down to 8 with VPU adds (8-sublane aligned slices).
    num_part = xw[:, 0:8, :]
    den_part = w[:, 0:8, :]
    for k in range(1, tr // 8):
        lo = k * 8
        num_part = num_part + xw[:, lo:lo + 8, :]
        den_part = den_part + w[:, lo:lo + 8, :]
    num_acc[...] += num_part
    den_acc[...] += den_part

    @pl.when(jnp.logical_and(ni == pl.num_programs(1) - 1,
                             j == pl.num_programs(2) - 1))
    def _finalize():
        # One sublane fold + one lane (XLU) reduction per kernel.
        num2d = jnp.sum(num_acc[...], axis=1)           # (C, 128)
        den2d = jnp.sum(den_acc[...], axis=1)
        num_ref[...] = jnp.sum(num2d, axis=1, keepdims=True)
        den_ref[...] = jnp.sum(den2d, axis=1, keepdims=True)


# ----------------------------------------------------------------------------
# pallas_call wrappers (return per-core partial numerators / denominators)
# ----------------------------------------------------------------------------
def _smooth_max_lanes_call(x3, hw, alpha, *, max_tile_m=4096,
                           vmem_budget_bytes=8 * 1024 * 1024):
    """x3: (N, C, HW_padded) with real extent `hw`."""
    n, c, hw_arr = x3.shape
    itemsize = jnp.dtype(x3.dtype).itemsize

    # Lane tile: multiple of 128, <= array extent, double-buffered input fits
    # a conservative VMEM budget (safe on v5e/v6e/v7x default scoped limits).
    tm = min(max_tile_m,
             max(128, vmem_budget_bytes // (2 * c * itemsize)),
             hw_arr)
    tm = max(128, (tm // 128) * 128)

    n_j = pl.cdiv(hw_arr, tm)               # lane tiles per batch element
    p_split = 2 if n_j >= 2 else 1          # 2-way split -> both TCs on v7x
    n_j_half = pl.cdiv(n_j, p_split)

    if p_split == 1:
        in_index_map = lambda p, ni, j: (ni, 0, j)
    else:
        last = n_j - 1
        # Clamp the (possibly) one-past-the-end block of the second half; its
        # contribution is zeroed in-kernel via the global-column mask.
        in_index_map = lambda p, ni, j: (ni, 0,
                                         jnp.minimum(p * n_j_half + j, last))

    kernel = functools.partial(_smoothmax_lanes_kernel, alpha=float(alpha),
                               tm=tm, hw=hw, n_j_half=n_j_half)

    cost = pl.CostEstimate(
        flops=3 * n * c * hw,
        transcendentals=n * c * hw,
        bytes_accessed=n * c * hw_arr * itemsize + 2 * p_split * c * 4,
    )

    return pl.pallas_call(
        kernel,
        out_shape=(jax.ShapeDtypeStruct((p_split, c, 1), jnp.float32),
                   jax.ShapeDtypeStruct((p_split, c, 1), jnp.float32)),
        grid_spec=pltpu.PrefetchScalarGridSpec(
            num_scalar_prefetch=0,
            grid=(p_split, n, n_j_half),
            in_specs=[pl.BlockSpec((None, c, tm), in_index_map)],
            out_specs=[pl.BlockSpec((None, c, 1), lambda p, ni, j: (p, 0, 0)),
                       pl.BlockSpec((None, c, 1), lambda p, ni, j: (p, 0, 0))],
            scratch_shapes=[pltpu.VMEM((c, 128), jnp.float32),   # numerator
                            pltpu.VMEM((c, 128), jnp.float32)],  # denominator
        ),
        compiler_params=pltpu.CompilerParams(
            dimension_semantics=("parallel", "arbitrary", "arbitrary")),
        cost_estimate=cost,
    )(x3)


def _smooth_max_packed_call(x4, alpha, *, max_rows_per_tile=32,
                            vmem_budget_bytes=8 * 1024 * 1024):
    """x4: (N, C, rows, 128) with rows = HW // 128 >= 8."""
    n, c, rows, _ = x4.shape
    itemsize = jnp.dtype(x4.dtype).itemsize

    # Sublane-row tile: multiple of 8, double-buffered input within budget.
    tr = min(max_rows_per_tile,
             max(8, vmem_budget_bytes // (2 * c * 128 * itemsize)),
             rows)
    tr = max(8, (tr // 8) * 8)

    n_j = pl.cdiv(rows, tr)                 # row tiles per batch element
    p_split = 2 if n_j >= 2 else 1
    n_j_half = pl.cdiv(n_j, p_split)

    if p_split == 1:
        in_index_map = lambda p, ni, j: (ni, 0, j, 0)
    else:
        last = n_j - 1
        in_index_map = lambda p, ni, j: (ni, 0,
                                         jnp.minimum(p * n_j_half + j, last), 0)

    kernel = functools.partial(_smoothmax_packed_kernel, alpha=float(alpha),
                               tr=tr, rows=rows, n_j_half=n_j_half)

    hw = rows * 128
    cost = pl.CostEstimate(
        flops=3 * n * c * hw,
        transcendentals=n * c * hw,
        bytes_accessed=n * c * hw * itemsize + 2 * p_split * c * 4,
    )

    return pl.pallas_call(
        kernel,
        out_shape=(jax.ShapeDtypeStruct((p_split, c, 1), jnp.float32),
                   jax.ShapeDtypeStruct((p_split, c, 1), jnp.float32)),
        grid_spec=pltpu.PrefetchScalarGridSpec(
            num_scalar_prefetch=0,
            grid=(p_split, n, n_j_half),
            in_specs=[pl.BlockSpec((None, c, tr, 128), in_index_map)],
            out_specs=[pl.BlockSpec((None, c, 1), lambda p, ni, j: (p, 0, 0)),
                       pl.BlockSpec((None, c, 1), lambda p, ni, j: (p, 0, 0))],
            scratch_shapes=[pltpu.VMEM((c, 8, 128), jnp.float32),   # numerator
                            pltpu.VMEM((c, 8, 128), jnp.float32)],  # denominator
        ),
        compiler_params=pltpu.CompilerParams(
            dimension_semantics=("parallel", "arbitrary", "arbitrary")),
        cost_estimate=cost,
    )(x4)


# ----------------------------------------------------------------------------
# Public entry point
# ----------------------------------------------------------------------------
def smooth_max(x, alpha=8.0):
    """x: (N, C, H, W) -> (C,) smooth-max pooled values (matches SmoothMax)."""
    n, c, h, w = x.shape
    hw = h * w

    if hw % 128 == 0 and hw // 128 >= 8:
        # Sublane-dense path: every vreg fully packed even for tiny C.
        x4 = x.reshape(n, c, hw // 128, 128)          # free reshape
        num, den = _smooth_max_packed_call(x4, alpha)
    else:
        x3 = x.reshape(n, c, hw)                      # free reshape
        if hw < 128:
            # Degenerate tiny-spatial case: pad lanes up to one vreg width
            # (masked in kernel, so pad value is irrelevant).
            x3 = jnp.pad(x3, ((0, 0), (0, 0), (0, 128 - hw)))
        num, den = _smooth_max_lanes_call(x3, hw, alpha)

    # Tiny epilogue: combine the per-core partials and divide.
    out = num.sum(axis=0) / den.sum(axis=0)           # (C, 1)
    return out.reshape(c).astype(x.dtype)


def smooth_max_ref(x, alpha=8.0):
    n, c, h, w = x.shape
    x2d = jnp.transpose(x, (1, 0, 2, 3)).reshape(c, -1).astype(jnp.float32)
    we = jnp.exp(alpha * x2d)
    return (jnp.sum(x2d * we, axis=1) / jnp.sum(we, axis=1)).astype(x.dtype)


if __name__ == "__main__":
    def _check(shape, seed):
        x = jax.random.normal(jax.random.PRNGKey(seed), shape, dtype=jnp.float32)
        out = jax.block_until_ready(smooth_max(x, alpha=8.0))
        ref = smooth_max_ref(x, alpha=8.0)
        assert out.shape == (shape[1],)
        assert jnp.allclose(out, ref, rtol=1e-4, atol=1e-4), (shape, out, ref)

    # Primary shape implied by the module: N=2, C=4, 16x16 spatial (lanes path).
    _check((2, 4, 16, 16), 0)
    # Packed path: multiple row tiles, 2-way parallel split, masked tail block.
    _check((2, 4, 96, 96), 1)
    # Lanes path: multiple lane tiles + clamped/masked tail (HW=400).
    _check((2, 4, 20, 20), 2)
    # Packed path, single tile, C filling all sublanes.
    _check((2, 8, 32, 32), 3)
    # Tiny spatial (HW < 128) pad branch.
    _check((1, 3, 10, 10), 4)

    print("KERNEL_OK")
</pallas_src>

<mosaic_0001>
module attributes {stable_mosaic.version = 11 : i64} {
  func.func @_smoothmax_lanes_kernel(%arg0: i32, %arg1: i32, %arg2: i32, %arg3: memref<1x4x256xf32, #tpu.memory_space<vmem>>, %arg4: memref<1x4x1xf32, #tpu.memory_space<vmem>>, %arg5: memref<1x4x1xf32, #tpu.memory_space<vmem>>, %arg6: memref<4x128xf32, #tpu.memory_space<vmem>>, %arg7: memref<4x128xf32, #tpu.memory_space<vmem>>) attributes {dimension_semantics = [#tpu.dimension_semantics<parallel>, #tpu.dimension_semantics<arbitrary>, #tpu.dimension_semantics<arbitrary>], iteration_bounds = array<i64: 1, 2, 1>, scalar_prefetch = 0 : i64, scratch_operands = 2 : i64, tpu.core_type = #tpu.core_type<tc>, window_params = [{transform_indices = @transform_0, window_bounds = array<i64: 1, 4, 256>}, {transform_indices = @transform_1, window_bounds = array<i64: 1, 4, 1>}, {transform_indices = @transform_2, window_bounds = array<i64: 1, 4, 1>}]} {
    %c0_i32 = arith.constant 0 : i32
    %0 = arith.cmpi eq, %arg1, %c0_i32 : i32
    %c0_i32_0 = arith.constant 0 : i32
    %1 = arith.cmpi eq, %arg2, %c0_i32_0 : i32
    %2 = arith.andi %0, %1 : i1
    %3 = arith.extui %2 : i1 to i32
    %c0_i32_1 = arith.constant 0 : i32
    %4 = arith.cmpi ne, %3, %c0_i32_1 : i32
    scf.if %4 {
      %cst_18 = arith.constant 0.000000e+00 : f32
      %40 = vector.broadcast %cst_18 : f32 to vector<4x128xf32>
      %c0_19 = arith.constant 0 : index
      %c0_20 = arith.constant 0 : index
      %41 = vector.load %arg6[%c0_19, %c0_20] : memref<4x128xf32, #tpu.memory_space<vmem>>, vector<4x128xf32>
      tpu.vector_store %arg6[%c0_19, %c0_20], %40 {strides = array<i32>} : memref<4x128xf32, #tpu.memory_space<vmem>>, vector<4x128xf32>,
      %cst_21 = arith.constant 0.000000e+00 : f32
      %42 = vector.broadcast %cst_21 : f32 to vector<4x128xf32>
      %c0_22 = arith.constant 0 : index
      %c0_23 = arith.constant 0 : index
      %43 = vector.load %arg7[%c0_22, %c0_23] : memref<4x128xf32, #tpu.memory_space<vmem>>, vector<4x128xf32>
      tpu.vector_store %arg7[%c0_22, %c0_23], %42 {strides = array<i32>} : memref<4x128xf32, #tpu.memory_space<vmem>>, vector<4x128xf32>,
    } else {
    }
    %c0 = arith.constant 0 : index
    %c0_2 = arith.constant 0 : index
    %c0_3 = arith.constant 0 : index
    %5 = vector.load %arg3[%c0, %c0_2, %c0_3] : memref<1x4x256xf32, #tpu.memory_space<vmem>>, vector<1x4x256xf32>
    %6 = vector.shape_cast %5 : vector<1x4x256xf32> to vector<4x256xf32>
    %c1_i32 = arith.constant 1 : i32
    %7 = arith.muli %arg0, %c1_i32 : i32
    %8 = arith.addi %7, %arg2 : i32
    %c256_i32 = arith.constant 256 : i32
    %9 = arith.muli %8, %c256_i32 : i32
    %10 = tpu.iota {dimensions = array<i32: 1>} : vector<4x256xi32>
    %11 = vector.broadcast %9 : i32 to vector<4x256xi32>
    %12 = arith.addi %11, %10 : vector<4x256xi32>
    %c256_i32_4 = arith.constant 256 : i32
    %13 = vector.broadcast %c256_i32_4 : i32 to vector<4x256xi32>
    %14 = arith.cmpi slt, %12, %13 : vector<4x256xi32>
    %cst = arith.constant 0.000000e+00 : f32
    %15 = vector.broadcast %cst : f32 to vector<4x256xf32>
    %16 = arith.select %14, %6, %15 : vector<4x256xi1>, vector<4x256xf32>
    %cst_5 = arith.constant 8.000000e+00 : f32
    %17 = vector.broadcast %cst_5 : f32 to vector<4x256xf32>
    %18 = arith.mulf %17, %16 : vector<4x256xf32>
    %19 = math.exp %18 : vector<4x256xf32>
    %cst_6 = arith.constant 0.000000e+00 : f32
    %20 = vector.broadcast %cst_6 : f32 to vector<4x256xf32>
    %21 = arith.select %14, %19, %20 : vector<4x256xi1>, vector<4x256xf32>
    %22 = arith.mulf %16, %21 : vector<4x256xf32>
    %23 = vector.extract_strided_slice %22 {offsets = [0, 0], sizes = [4, 128], strides = [1, 1]} : vector<4x256xf32> to vector<4x128xf32>
    %24 = vector.extract_strided_slice %21 {offsets = [0, 0], sizes = [4, 128], strides = [1, 1]} : vector<4x256xf32> to vector<4x128xf32>
    %25 = vector.extract_strided_slice %22 {offsets = [0, 128], sizes = [4, 128], strides = [1, 1]} : vector<4x256xf32> to vector<4x128xf32>
    %26 = arith.addf %23, %25 : vector<4x128xf32>
    %27 = vector.extract_strided_slice %21 {offsets = [0, 128], sizes = [4, 128], strides = [1, 1]} : vector<4x256xf32> to vector<4x128xf32>
    %28 = arith.addf %24, %27 : vector<4x128xf32>
    %c0_7 = arith.constant 0 : index
    %c0_8 = arith.constant 0 : index
    %29 = vector.load %arg6[%c0_7, %c0_8] : memref<4x128xf32, #tpu.memory_space<vmem>>, vector<4x128xf32>
    %30 = arith.addf %29, %26 : vector<4x128xf32>
    %c0_9 = arith.constant 0 : index
    %c0_10 = arith.constant 0 : index
    %31 = vector.load %arg6[%c0_9, %c0_10] : memref<4x128xf32, #tpu.memory_space<vmem>>, vector<4x128xf32>
    tpu.vector_store %arg6[%c0_9, %c0_10], %30 {strides = array<i32>} : memref<4x128xf32, #tpu.memory_space<vmem>>, vector<4x128xf32>,
    %c0_11 = arith.constant 0 : index
    %c0_12 = arith.constant 0 : index
    %32 = vector.load %arg7[%c0_11, %c0_12] : memref<4x128xf32, #tpu.memory_space<vmem>>, vector<4x128xf32>
    %33 = arith.addf %32, %28 : vector<4x128xf32>
    %c0_13 = arith.constant 0 : index
    %c0_14 = arith.constant 0 : index
    %34 = vector.load %arg7[%c0_13, %c0_14] : memref<4x128xf32, #tpu.memory_space<vmem>>, vector<4x128xf32>
    tpu.vector_store %arg7[%c0_13, %c0_14], %33 {strides = array<i32>} : memref<4x128xf32, #tpu.memory_space<vmem>>, vector<4x128xf32>,
    %c1_i32_15 = arith.constant 1 : i32
    %35 = arith.cmpi eq, %arg1, %c1_i32_15 : i32
    %c0_i32_16 = arith.constant 0 : i32
    %36 = arith.cmpi eq, %arg2, %c0_i32_16 : i32
    %37 = arith.andi %35, %36 : i1
    %38 = arith.extui %37 : i1 to i32
    %c0_i32_17 = arith.constant 0 : i32
    %39 = arith.cmpi ne, %38, %c0_i32_17 : i32
    scf.if %39 {
      %c0_18 = arith.constant 0 : index
      %c0_19 = arith.constant 0 : index
      %40 = vector.load %arg6[%c0_18, %c0_19] : memref<4x128xf32, #tpu.memory_space<vmem>>, vector<4x128xf32>
      %cst_20 = arith.constant dense<0.000000e+00> : vector<4xf32>
      %41 = vector.multi_reduction <add>, %40, %cst_20 [1] : vector<4x128xf32> to vector<4xf32>
      %42 = vector.shape_cast %41 : vector<4xf32> to vector<4x1xf32>
      %c0_21 = arith.constant 0 : index
      %c0_22 = arith.constant 0 : index
      %c0_23 = arith.constant 0 : index
      %43 = vector.load %arg4[%c0_21, %c0_22, %c0_23] : memref<1x4x1xf32, #tpu.memory_space<vmem>>, vector<1x4x1xf32>
      %44 = vector.shape_cast %43 : vector<1x4x1xf32> to vector<4x1xf32>
      %45 = vector.shape_cast %42 : vector<4x1xf32> to vector<1x4x1xf32>
      tpu.vector_store %arg4[%c0_21, %c0_22, %c0_23], %45 {strides = array<i32>} : memref<1x4x1xf32, #tpu.memory_space<vmem>>, vector<1x4x1xf32>,
      %c0_24 = arith.constant 0 : index
      %c0_25 = arith.constant 0 : index
      %46 = vector.load %arg7[%c0_24, %c0_25] : memref<4x128xf32, #tpu.memory_space<vmem>>, vector<4x128xf32>
      %cst_26 = arith.constant dense<0.000000e+00> : vector<4xf32>
      %47 = vector.multi_reduction <add>, %46, %cst_26 [1] : vector<4x128xf32> to vector<4xf32>
      %48 = vector.shape_cast %47 : vector<4xf32> to vector<4x1xf32>
      %c0_27 = arith.constant 0 : index
      %c0_28 = arith.constant 0 : index
      %c0_29 = arith.constant 0 : index
      %49 = vector.load %arg5[%c0_27, %c0_28, %c0_29] : memref<1x4x1xf32, #tpu.memory_space<vmem>>, vector<1x4x1xf32>
      %50 = vector.shape_cast %49 : vector<1x4x1xf32> to vector<4x1xf32>
      %51 = vector.shape_cast %48 : vector<4x1xf32> to vector<1x4x1xf32>
      tpu.vector_store %arg5[%c0_27, %c0_28, %c0_29], %51 {strides = array<i32>} : memref<1x4x1xf32, #tpu.memory_space<vmem>>, vector<1x4x1xf32>,
    } else {
    }
    return
  }
  func.func @transform_0(%arg0: i32, %arg1: i32, %arg2: i32) -> (i32, i32, i32) {
    %c0_i32 = arith.constant 0 : i32
    %c0_i32_0 = arith.constant 0 : i32
    return %arg1, %c0_i32, %arg2 : i32, i32, i32
  }
  func.func @transform_1(%arg0: i32, %arg1: i32, %arg2: i32) -> (i32, i32, i32) {
    %c0_i32 = arith.constant 0 : i32
    %c0_i32_0 = arith.constant 0 : i32
    %c0_i32_1 = arith.constant 0 : i32
    return %arg0, %c0_i32, %c0_i32_0 : i32, i32, i32
  }
  func.func @transform_2(%arg0: i32, %arg1: i32, %arg2: i32) -> (i32, i32, i32) {
    %c0_i32 = arith.constant 0 : i32
    %c0_i32_0 = arith.constant 0 : i32
    %c0_i32_1 = arith.constant 0 : i32
    return %arg0, %c0_i32, %c0_i32_0 : i32, i32, i32
  }
}

</mosaic_0001>

<llo_original>
// kernel: tpu_custom_call.1
$region0: #{tpu_custom_call.1}
  #allocation0 [shape = 'u32[]', space=smem, size = 0x4, offset = 0x4, fixed_abs, tag = 'smem constant byte address 0x4 - core index']
  #allocation1 [shape = 'u32[144,128]{1,0:T(1,128)}', space=vmem, size = 0x12000, scoped, tag = 'internal scratch']
  #allocation2 [shape = 'f32[4,128]{1,0:T(4,128)}', space=vmem, size = 0x800, scoped, tag = 'scratch operand']
  #allocation3 [shape = 'f32[4,128]{1,0:T(4,128)}', space=vmem, size = 0x800, scoped, tag = 'scratch operand']
  %s0 = inlined_call_operand.hbm [shape: f32[2,4,256], index: 0, kind: input, shape index: {}]
  %s1 = inlined_call_operand.vmem [shape: f32[1,4,1], index: 1, kind: output, shape index: {0}]
  %s2 = inlined_call_operand.vmem [shape: f32[1,4,1], index: 2, kind: output, shape index: {1}]
  %3 = xla_tuple %s1, %s2
  %s4 = sld [smem:[#allocation0]]
  $region57: #{tpu_custom_call.1} parent=0
    _
  %s6 = ssub.s32 1, %s4
  %s7 = scalar_select 0, %s6, %s4
  $region1: #{tpu_custom_call.1} parent=0
    #allocation4 [shape = 'u8[8192]{0}', space=vmem, size = 0x2000, scoped, tag = 'input window, operand 0']
    #allocation5 [shape = 's32[2]{0}', space=sflag, size = 0x8, scoped, tag = 'scoped memory for tpu_custom_call.1']
    %8 = vsyncpa [#allocation5], 0
    %s9 = scalar_lea.sflag [#allocation5], 1
    %10 = vsyncpa %s9, 0
    loop: start=0, step=1, limit=4
    $region2: #{tpu_custom_call.1} parent=1 // loop_pre_header
      _
    $region3: #{tpu_custom_call.1} parent=1 // loop_header
      %s12 = sphi 0, %s16
      %p13 = scmp.ge.s32.totalorder %s12, 4
      %s19 = sphi 0, %s38
      %s20 = sphi 0, %s34
      %s21 = sphi 0, %s30
      %s22 = sphi 0, %s19
      %s23 = sphi 0, %s20
      %s24 = sphi 0, %s21
      %s25 = sphi 0, %s22
      %s26 = sphi 0, %s23
      %s27 = sphi 0, %s24
      %s43 = sphi 0, %s45
      %s46 = sphi 0, %s43
      %s47 = sphi 0, %s46
      %s63 = sphi 0, %s47
      %s69 = sphi 0, %s71
      %s72 = sphi 0, %s69
      %s73 = sphi 0, %s72
      %s89 = sphi 0, %s73
      %s95 = sphi 0, %s97
      %s98 = sphi 0, %s95
      %s99 = sphi 0, %s98
      %s115 = sphi 0, %s99
    $region4: #{tpu_custom_call.1} parent=1 // loop_header_branch
      %15 = sbr.rel (%p13) target = $region8
    $region5: #{tpu_custom_call.1} parent=1 // loop_body
      %s17 = ssub.s32 %s12, 1
      %s18 = ssub.s32 %s12, 2
      %s28 = sadd.s32 1, %s21
      %p29 = scmp.ge.s32.totalorder %s28, 1
      %s30 = scalar_select %p29, 0, %s28
      %s31 = sadd.s32 1, %s20
      %s32 = scalar_select %p29, %s31, %s20
      %p33 = scmp.ge.s32.totalorder %s32, 2
      %s34 = scalar_select %p33, 0, %s32
      %s35 = sadd.s32 1, %s19
      %s36 = scalar_select %p33, %s35, %s19
      %p37 = scmp.ge.s32.totalorder %s36, 1
      %s38 = scalar_select %p37, 0, %s36
      %s39 = ssub.s32 %s20, %s34
      %s40 = ssub.s32 %s21, %s30
      %s41 = sor.u32 %s39, %s40
      %p42 = scmp.eq.s32.totalorder %s41, 0
      %s44 = sadd.s32 %s43, 1
      %s45 = scalar_select %p42, %s43, %s44
      %p48 = pneg %p42
      %p49 = scmp.eq.s32.totalorder %s12, 1
      %p50 = por %p48, %p49
      %p51 = scmp.ne.s32.totalorder %s43, %s46
      %p52 = scmp.eq.s32.totalorder %s12, 0
      %p53 = por %p51, %p52
      %p54 = scmp.ne.s32.totalorder %s43, %s46
      %p55 = scmp.eq.s32.totalorder %s17, 1
      %p56 = por %p54, %p55
      %p57 = scmp.ne.s32.totalorder %s46, %s47
      %p58 = scmp.eq.s32.totalorder %s17, 0
      %p59 = por %p57, %p58
      %p60 = scmp.ne.s32.totalorder %s46, %s47
      %p61 = scmp.eq.s32.totalorder %s18, 1
      %p62 = por %p60, %p61
      %p64 = scmp.ne.s32.totalorder %s47, %s63
      %p65 = scmp.eq.s32.totalorder %s18, 0
      %p66 = por %p64, %p65
      %s67 = ssub.s32 %s19, %s38
      %p68 = scmp.eq.s32.totalorder %s67, 0
      %s70 = sadd.s32 %s69, 1
      %s71 = scalar_select %p68, %s69, %s70
      %p74 = pneg %p68
      %p75 = scmp.eq.s32.totalorder %s12, 1
      %p76 = por %p74, %p75
      %p77 = scmp.ne.s32.totalorder %s69, %s72
      %p78 = scmp.eq.s32.totalorder %s12, 0
      %p79 = por %p77, %p78
      %p80 = scmp.ne.s32.totalorder %s69, %s72
      %p81 = scmp.eq.s32.totalorder %s17, 1
      %p82 = por %p80, %p81
      %p83 = scmp.ne.s32.totalorder %s72, %s73
      %p84 = scmp.eq.s32.totalorder %s17, 0
      %p85 = por %p83, %p84
      %p86 = scmp.ne.s32.totalorder %s72, %s73
      %p87 = scmp.eq.s32.totalorder %s18, 1
      %p88 = por %p86, %p87
      %p90 = scmp.ne.s32.totalorder %s73, %s89
      %p91 = scmp.eq.s32.totalorder %s18, 0
      %p92 = por %p90, %p91
      %s93 = ssub.s32 %s19, %s38
      %p94 = scmp.eq.s32.totalorder %s93, 0
      %s96 = sadd.s32 %s95, 1
      %s97 = scalar_select %p94, %s95, %s96
      %p100 = pneg %p94
      %p101 = scmp.eq.s32.totalorder %s12, 1
      %p102 = por %p100, %p101
      %p103 = scmp.ne.s32.totalorder %s95, %s98
      %p104 = scmp.eq.s32.totalorder %s12, 0
      %p105 = por %p103, %p104
      %p106 = scmp.ne.s32.totalorder %s95, %s98
      %p107 = scmp.eq.s32.totalorder %s17, 1
      %p108 = por %p106, %p107
      %p109 = scmp.ne.s32.totalorder %s98, %s99
      %p110 = scmp.eq.s32.totalorder %s17, 0
      %p111 = por %p109, %p110
      %p112 = scmp.ne.s32.totalorder %s98, %s99
      %p113 = scmp.eq.s32.totalorder %s18, 1
      %p114 = por %p112, %p113
      %p116 = scmp.ne.s32.totalorder %s99, %s115
      %p117 = scmp.eq.s32.totalorder %s18, 0
      %p118 = por %p116, %p117
      %p119 = scmp.le.s32.totalorder 1, %s12
      %p120 = scmp.lt.s32.totalorder %s12, 3
      %p121 = pnand %p119, %p120
      %p122 = pneg %p121
      // Predicated region
      $region9: #{tpu_custom_call.1} parent=5 // pred_check
        _
      $region10: #{tpu_custom_call.1} parent=5 // pred_check_branch
        %124 = sbr.rel (%p121) target = $region12
      $region11: #{tpu_custom_call.1} parent=5 // pred_region
        %s125 = ssub.s32 %s12, 1
      $region12: #{tpu_custom_call.1} parent=5 // pred_fallthru
        _
      %p126 = scmp.lt.s32.totalorder %s12, 2
      // Predicated region
      $region13: #{tpu_custom_call.1} parent=5 // pred_check
        %p127 = pneg %p126
      $region14: #{tpu_custom_call.1} parent=5 // pred_check_branch
        %129 = sbr.rel (%p127) target = $region16
      $region15: #{tpu_custom_call.1} parent=5 // pred_region
        // Predicated region
        $region17: #{tpu_custom_call.1} parent=15 // pred_check
          %p130 = pneg %p53
        $region18: #{tpu_custom_call.1} parent=15 // pred_check_branch
          %132 = sbr.rel (%p130) target = $region20
        $region19: #{tpu_custom_call.1} parent=15 // pred_region
          %s133 = sand.u32 %s43, 1
          %s134 = scalar_lea.sflag [#allocation5], %s133
          %s135 = sand.u32 %s43, 1
          %s136 = smul.addr %s135, 8
          %s137 = scalar_lea.vmem [#allocation4], %s136
          %s138 = smul.u32 2, %s21
          %s140 = ssub.s32 128, 128
          %141 = vsyncadd %s134, %s140
          %s142 = smul.addr %s20, 2
          %s143 = sadd.s32 %s138, %s142
          %s144 = smul.addr %s143, 64
          %s145 = scalar_lea.hbm %s0, %s144
          %s147 = sshll.u32 %s137, 4
          %s148 = int_to_ptr.vmem [resolvable:$true] %s147
          %150 = dma.hbm_to_vmem [thread:$0]  %s145, 128, %s148, %s134
        $region20: #{tpu_custom_call.1} parent=15 // pred_fallthru
          _
      $region16: #{tpu_custom_call.1} parent=5 // pred_fallthru
        _
      %p151 = scmp.le.s32.totalorder 1, %s12
      %p152 = scmp.lt.s32.totalorder %s12, 3
      %p153 = pnand %p151, %p152
      %p154 = pneg %p153
      // Predicated region
      $region21: #{tpu_custom_call.1} parent=5 // pred_check
        _
      $region22: #{tpu_custom_call.1} parent=5 // pred_check_branch
        %156 = sbr.rel (%p153) target = $region24
      $region23: #{tpu_custom_call.1} parent=5 // pred_region
        %s157 = ssub.s32 %s12, 1
        %s158 = sand.u32 %s46, 1
        %s159 = scalar_lea.sflag [#allocation5], %s158
        %s160 = sand.u32 %s46, 1
        %s161 = smul.addr %s160, 8
        %s162 = scalar_lea.vmem [#allocation4], %s161
        // Predicated region
        $region25: #{tpu_custom_call.1} parent=23 // pred_check
          %p163 = pneg %p59
        $region26: #{tpu_custom_call.1} parent=23 // pred_check_branch
          %165 = sbr.rel (%p163) target = $region28
        $region27: #{tpu_custom_call.1} parent=23 // pred_region
          %166 = dma.done %s159, 128
        $region28: #{tpu_custom_call.1} parent=23 // pred_fallthru
          _
        %s167 = sand.u32 %s46, 1
        %s168 = scalar_lea.sflag [#allocation5], %s167
        %s169 = sand.u32 %s46, 1
        %s170 = smul.addr %s169, 8
        %s171 = scalar_lea.vmem [#allocation4], %s170
        %p172 = pneg %p59
        %p173 = pneg %p56
        %p174 = pneg %p85
        %p175 = pneg %p82
        %p176 = scmp.lt.s32.totalorder %s22, 0
        %s177 = scalar_select %p176, %s22, 0
        %s178 = smul.addr %s177, 4
        %s179 = scalar_lea.vmem %s1, %s178
        %p180 = pneg %p111
        %p181 = pneg %p108
        %p182 = scmp.lt.s32.totalorder %s22, 0
        %s183 = scalar_select %p182, %s22, 0
        %s184 = smul.addr %s183, 4
        %s185 = scalar_lea.vmem %s2, %s184
        %s186 = smul.u32 2, %s24
        %p187 = scmp.lt.s32.totalorder %s22, 0
        %s188 = scalar_select %p187, %s22, 0
        %s189 = smul.addr %s188, 4
        %s190 = scalar_lea.vmem %s1, %s189
        %p191 = scmp.lt.s32.totalorder %s22, 0
        %s192 = scalar_select %p191, %s22, 0
        %s193 = smul.addr %s192, 4
        %s194 = scalar_lea.vmem %s2, %s193
        %p195 = scmp.eq.s32.totalorder %s23, 0
        %p196 = scmp.eq.s32.totalorder %s24, 0
        %p197 = pnand %p195, %p196
        %p198 = pneg %p197
        // Predicated region
        $region29: #{tpu_custom_call.1} parent=23 // pred_check
          _
        $region30: #{tpu_custom_call.1} parent=23 // pred_check_branch
          %200 = sbr.rel (%p197) target = $region32
        $region31: #{tpu_custom_call.1} parent=23 // pred_region
          %201 = vst [vmem:[#allocation2] sm:$0xf] 0.0
          %202 = vst [vmem:[#allocation3] sm:$0xf] 0.0
        $region32: #{tpu_custom_call.1} parent=23 // pred_fallthru
          _
        %v203 = vld [vmem:[%s162] sm:$0xff]
        %s204 = sadd.s32 %s22, %s24
        %s205 = smul.u32 %s204, 256
        %v206 = vlaneseq
        %v207 = vand.u32 %v206, 127
        %v208 = vadd.s32 %v207, 128
        %v209 = vstv %s205
        %v210 = vadd.s32 %v209, %v207
        %v211 = vadd.s32 %v209, %v208
        %vm212 = vcmp.lt.s32.totalorder %v210, 256
        %vm213 = vcmp.lt.s32.totalorder %v211, 256
        %v215 = vcombine.high %v203, %v203
        %v217 = vsel %vm212, %v203, 0.0
        %v218 = vsel %vm213, %v215, 0.0
        %v219 = vmul.f32 %v217, 8.0
        %v220 = vmul.f32 %v218, 8.0
        %v221 = vmul.f32 %v219, 1.442695
        %v222 = vpow.pop %v221
        %v223 = vmul.f32 %v220, 1.442695
        %v224 = vpow.pop %v223
        %v225 = vsel %vm212, %v222, 0.0
        %v226 = vsel %vm213, %v224, 0.0
        %v227 = vmul.f32 %v217, %v225
        %v228 = vmul.f32 %v218, %v226
        %v229 = vadd.f32 %v227, %v228
        %v230 = vadd.f32 %v225, %v226
        %v231 = vld [vmem:[#allocation2] sm:$0xf]
        %v232 = vadd.f32 %v231, %v229
        %233 = vst [vmem:[#allocation2] sm:$0xf] %v232
        %v234 = vld [vmem:[#allocation3] sm:$0xf]
        %v235 = vadd.f32 %v234, %v230
        %236 = vst [vmem:[#allocation3] sm:$0xf] %v235
        %p237 = scmp.eq.s32.totalorder %s23, 1
        %p238 = pnand %p237, %p196
        %p239 = pneg %p238
        // Predicated region
        $region33: #{tpu_custom_call.1} parent=23 // pred_check
          _
        $region34: #{tpu_custom_call.1} parent=23 // pred_check_branch
          %241 = sbr.rel (%p238) target = $region36
        $region35: #{tpu_custom_call.1} parent=23 // pred_region
          %v242 = vld [vmem:[#allocation2] sm:$0xf]
          %vm243 = vcmask 1043456
          %v244 = vsel %vm243, %v242, 0.0
          %245 = vadd.xlane.f32.xlu0 %v244
          %v246 = vpop.xlane.xlu0 %245
          %vm247 = vcmask 3072
          %248 = vst.msk [vmem:[%s190] sm:$0xf] %vm247, %v246
          %v249 = vld [vmem:[#allocation3] sm:$0xf]
          %v250 = vsel %vm243, %v249, 0.0
          %251 = vadd.xlane.f32.xlu0 %v250
          %v252 = vpop.xlane.xlu0 %251
          %253 = vst.msk [vmem:[%s194] sm:$0xf] %vm247, %v252
        $region36: #{tpu_custom_call.1} parent=23 // pred_fallthru
          _
        %p254 = scmp.lt.s32.totalorder %s22, 0
        %s255 = scalar_select %p254, %s22, 0
        %s256 = smul.addr %s255, 4
        %s257 = scalar_lea.vmem %s1, %s256
        %p258 = scmp.lt.s32.totalorder %s22, 0
        %s259 = scalar_select %p258, %s22, 0
        %s260 = smul.addr %s259, 4
        %s261 = scalar_lea.vmem %s2, %s260
        // Predicated region
        $region37: #{tpu_custom_call.1} parent=23 // pred_check
          %p262 = pneg %p82
        $region38: #{tpu_custom_call.1} parent=23 // pred_check_branch
          %264 = sbr.rel (%p262) target = $region40
        $region39: #{tpu_custom_call.1} parent=23 // pred_region
          _
        $region40: #{tpu_custom_call.1} parent=23 // pred_fallthru
          _
        // Predicated region
        $region41: #{tpu_custom_call.1} parent=23 // pred_check
          %p265 = pneg %p108
        $region42: #{tpu_custom_call.1} parent=23 // pred_check_branch
          %267 = sbr.rel (%p265) target = $region44
        $region43: #{tpu_custom_call.1} parent=23 // pred_region
          _
        $region44: #{tpu_custom_call.1} parent=23 // pred_fallthru
          _
        // Predicated region
        $region45: #{tpu_custom_call.1} parent=23 // pred_check
          %p268 = pneg %p82
        $region46: #{tpu_custom_call.1} parent=23 // pred_check_branch
          %270 = sbr.rel (%p268) target = $region48
        $region47: #{tpu_custom_call.1} parent=23 // pred_region
          %p271 = scmp.lt.s32.totalorder %s22, 0
          %s272 = scalar_select %p271, %s22, 0
          %s273 = smul.addr %s272, 4
          %s274 = scalar_lea.vmem %s1, %s273
        $region48: #{tpu_custom_call.1} parent=23 // pred_fallthru
          _
        // Predicated region
        $region49: #{tpu_custom_call.1} parent=23 // pred_check
          %p275 = pneg %p108
        $region50: #{tpu_custom_call.1} parent=23 // pred_check_branch
          %277 = sbr.rel (%p275) target = $region52
        $region51: #{tpu_custom_call.1} parent=23 // pred_region
          %p278 = scmp.lt.s32.totalorder %s22, 0
          %s279 = scalar_select %p278, %s22, 0
          %s280 = smul.addr %s279, 4
          %s281 = scalar_lea.vmem %s2, %s280
        $region52: #{tpu_custom_call.1} parent=23 // pred_fallthru
          _
      $region24: #{tpu_custom_call.1} parent=5 // pred_fallthru
        _
      %p282 = scmp.le.s32.totalorder 2, %s12
      // Predicated region
      $region53: #{tpu_custom_call.1} parent=5 // pred_check
        %p283 = pneg %p282
      $region54: #{tpu_custom_call.1} parent=5 // pred_check_branch
        %285 = sbr.rel (%p283) target = $region56
      $region55: #{tpu_custom_call.1} parent=5 // pred_region
        %s286 = ssub.s32 %s12, 2
      $region56: #{tpu_custom_call.1} parent=5 // pred_fallthru
        _
    $region6: #{tpu_custom_call.1} parent=1 // loop_footer
      %s16 = sadd.s32 1, %s12
    $region7: #{tpu_custom_call.1} parent=1 // loop_footer_branch
      %11 = sbr.rel target = $region3
    $region8: #{tpu_custom_call.1} parent=1 // loop_exit
      _
    %287 = vsyncpa [#allocation5], 1
    %s288 = scalar_lea.sflag [#allocation5], 1
    %289 = vsyncpa %s288, 1

</llo_original>
